<compile_context>
chip_gen: v7x
topology: tpu7x:2x2x1
jax: 0.10.0
libtpu: 0.0.40
codegen_flags: <defaults>
</compile_context>

<pallas_src>
import functools

import jax
import jax.numpy as jnp
from jax.experimental import pallas as pl
from jax.experimental.pallas import tpu as pltpu

N_OUT = 10  # hardcoded final Linear(hidden_dim, 10) in the PyTorch module


def _round_up(x, m):
    return ((x + m - 1) // m) * m


def _packed_dims(state_dim, hidden_dim, n_out=N_OUT):
    K1 = _round_up(state_dim, 128)                       # padded input (lane) width
    L = _round_up(max(2 * hidden_dim, 2 * n_out), 128)   # fused hidden/output lane width
    return K1, L


def pack_params(params, state_dim, hidden_dim, n_out=N_OUT):
    """Fuse both heads and pack into two aligned slabs.

    Returns:
      w_slab: (K1 + 2L, L) bfloat16 -- rows [0,K1)=W1, [K1,K1+L)=W2, [K1+L,K1+2L)=W3
      b_slab: (8, L) float32        -- rows 0/1/2 = fused biases of layers 1/2/3
    Q head lives in lanes [0,H) (layers 1/2) and [0,n_out) (layer 3);
    pi_b head in lanes [H,2H) and [n_out,2*n_out).  Padding is exact zero.
    """
    S, H = state_dim, hidden_dim
    K1, L = _packed_dims(S, H, n_out)

    w1 = jnp.zeros((K1, L), jnp.float32)
    w1 = w1.at[:S, :H].set(params["qw1"]).at[:S, H:2 * H].set(params["pw1"])
    w2 = jnp.zeros((L, L), jnp.float32)
    w2 = w2.at[:H, :H].set(params["qw2"]).at[H:2 * H, H:2 * H].set(params["pw2"])
    w3 = jnp.zeros((L, L), jnp.float32)
    w3 = w3.at[:H, :n_out].set(params["qw3"]).at[H:2 * H, n_out:2 * n_out].set(params["pw3"])
    w_slab = jnp.concatenate([w1, w2, w3], axis=0).astype(jnp.bfloat16)

    b_slab = jnp.zeros((8, L), jnp.float32)
    b_slab = b_slab.at[0, :H].set(params["qb1"][0]).at[0, H:2 * H].set(params["pb1"][0])
    b_slab = b_slab.at[1, :H].set(params["qb2"][0]).at[1, H:2 * H].set(params["pb2"][0])
    b_slab = b_slab.at[2, :n_out].set(params["qb3"][0]).at[2, n_out:2 * n_out].set(params["pb3"][0])
    return w_slab, b_slab


def _bcqf_kernel(x_ref, w_ref, b_ref, out_ref, *, K1, L, n_out):
    x = x_ref[...]                              # (TB, K1) bf16
    w1 = w_ref[pl.ds(0, K1), :]                 # (K1, L) bf16
    w2 = w_ref[pl.ds(K1, L), :]                 # (L, L)  bf16
    w3 = w_ref[pl.ds(K1 + L, L), :]             # (L, L)  bf16

    # Fused MLP: both heads ride in the same 3 MXU matmuls (f32 accumulate).
    h = jnp.dot(x, w1, preferred_element_type=jnp.float32) + b_ref[pl.ds(0, 1), :]
    h = jnp.maximum(h, 0.0).astype(jnp.bfloat16)
    h = jnp.dot(h, w2, preferred_element_type=jnp.float32) + b_ref[pl.ds(1, 1), :]
    h = jnp.maximum(h, 0.0).astype(jnp.bfloat16)
    o = jnp.dot(h, w3, preferred_element_type=jnp.float32) + b_ref[pl.ds(2, 1), :]

    q = o[:, 0:n_out]                           # Q head
    p_logits = o[:, n_out:2 * n_out]            # pi_b head (logical width 10 -> no pad masking needed)

    # log_softmax over the 10 real logits (f32, max-shift for stability)
    m = jnp.max(p_logits, axis=-1, keepdims=True)
    s = p_logits - m
    logp = s - jnp.log(jnp.sum(jnp.exp(s), axis=-1, keepdims=True))

    # Single lane-packed store: [q | log_probs | p_logits]
    out_ref[...] = jnp.concatenate([q, logp, p_logits], axis=-1).astype(out_ref.dtype)


@functools.partial(jax.jit, static_argnames=("state_dim", "hidden_dim"))
def bcqf_forward(x, params, state_dim, hidden_dim):
    """x: (B, state_dim) float32. Returns (q_values, log_softmax(p_logits), p_logits)."""
    n_out = N_OUT
    B, S = x.shape
    assert S == state_dim
    K1, L = _packed_dims(state_dim, hidden_dim, n_out)

    # NOTE: for repeated inference, pack_params once outside and reuse the slabs.
    w_slab, b_slab = pack_params(params, state_dim, hidden_dim, n_out)

    # Batch tiling: exact tiles (zero-pad the batch) so no partial blocks exist.
    TB = min(256, _round_up(B, 8))
    B_pad = _round_up(B, TB)
    x_p = jnp.zeros((B_pad, K1), jnp.bfloat16).at[:B, :S].set(x.astype(jnp.bfloat16))

    kernel = functools.partial(_bcqf_kernel, K1=K1, L=L, n_out=n_out)
    out = pl.pallas_call(
        kernel,
        out_shape=jax.ShapeDtypeStruct((B_pad, 3 * n_out), jnp.float32),
        grid=(B_pad // TB,),
        in_specs=[
            pl.BlockSpec((TB, K1), lambda i: (i, 0)),          # x tile (pipelined over batch)
            pl.BlockSpec((K1 + 2 * L, L), lambda i: (0, 0)),   # weight slab, resident in VMEM
            pl.BlockSpec((8, L), lambda i: (0, 0)),            # bias slab, resident in VMEM
        ],
        out_specs=pl.BlockSpec((TB, 3 * n_out), lambda i: (i, 0)),
        compiler_params=pltpu.CompilerParams(dimension_semantics=("parallel",)),
    )(x_p, w_slab, b_slab)

    q = out[:B, 0:n_out]
    logp = out[:B, n_out:2 * n_out]
    p_logits = out[:B, 2 * n_out:3 * n_out]
    return q, logp, p_logits


def init_params(key, state_dim, hidden_dim):
    """PyTorch-style init: U(-1/sqrt(fan_in), 1/sqrt(fan_in)); weights stored (in, out)."""
    dims = [(state_dim, hidden_dim), (hidden_dim, hidden_dim), (hidden_dim, N_OUT)]
    params = {}
    keys = jax.random.split(key, 12)
    ki = 0
    for prefix in ("q", "p"):
        for li, (fan_in, fan_out) in enumerate(dims, start=1):
            bound = 1.0 / jnp.sqrt(jnp.float32(fan_in))
            params[f"{prefix}w{li}"] = jax.random.uniform(
                keys[ki], (fan_in, fan_out), jnp.float32, minval=-bound, maxval=bound)
            ki += 1
            params[f"{prefix}b{li}"] = jax.random.uniform(
                keys[ki], (1, fan_out), jnp.float32, minval=-bound, maxval=bound)
            ki += 1
    return params


def _reference_f32(x, p):
    """Original module semantics, full f32."""
    h = jnp.maximum(x @ p["qw1"] + p["qb1"], 0.0)
    h = jnp.maximum(h @ p["qw2"] + p["qb2"], 0.0)
    q = h @ p["qw3"] + p["qb3"]
    g = jnp.maximum(x @ p["pw1"] + p["pb1"], 0.0)
    g = jnp.maximum(g @ p["pw2"] + p["pb2"], 0.0)
    pl_ = g @ p["pw3"] + p["pb3"]
    return q, jax.nn.log_softmax(pl_, axis=-1), pl_


def _reference_bf16(x, p):
    """Mirrors the kernel's mixed precision: bf16 matmul operands, f32 elementwise."""
    bf = jnp.bfloat16

    def head(prefix):
        a = x.astype(bf)
        h = jnp.maximum(jnp.dot(a, p[f"{prefix}w1"].astype(bf),
                                preferred_element_type=jnp.float32) + p[f"{prefix}b1"], 0.0).astype(bf)
        h = jnp.maximum(jnp.dot(h, p[f"{prefix}w2"].astype(bf),
                                preferred_element_type=jnp.float32) + p[f"{prefix}b2"], 0.0).astype(bf)
        return jnp.dot(h, p[f"{prefix}w3"].astype(bf),
                       preferred_element_type=jnp.float32) + p[f"{prefix}b3"]

    q = head("q")
    pl_ = head("p")
    return q, jax.nn.log_softmax(pl_, axis=-1), pl_


if __name__ == "__main__":
    state_dim, hidden_dim, batch = 16, 32, 8

    key = jax.random.PRNGKey(0)
    k_params, k_x = jax.random.split(key)
    params = init_params(k_params, state_dim, hidden_dim)
    x = jax.random.normal(k_x, (batch, state_dim), jnp.float32)

    q_values, log_probs, p_logits = bcqf_forward(x, params, state_dim, hidden_dim)
    jax.block_until_ready((q_values, log_probs, p_logits))

    # Tight check vs. a plain-JAX reference using the same mixed precision.
    q_r, logp_r, pl_r = _reference_bf16(x, params)
    assert jnp.allclose(q_values, q_r, atol=5e-3), "q_values mismatch (bf16 ref)"
    assert jnp.allclose(log_probs, logp_r, atol=5e-3), "log_softmax mismatch (bf16 ref)"
    assert jnp.allclose(p_logits, pl_r, atol=5e-3), "p_logits mismatch (bf16 ref)"

    # Loose check vs. the original full-f32 module semantics (bf16 matmul drift only).
    q_f, logp_f, pl_f = _reference_f32(x, params)
    assert jnp.allclose(q_values, q_f, atol=5e-2), "q_values drift vs f32 reference"
    assert jnp.allclose(log_probs, logp_f, atol=5e-2), "log_softmax drift vs f32 reference"
    assert jnp.allclose(p_logits, pl_f, atol=5e-2), "p_logits drift vs f32 reference"

    print("KERNEL_OK")
</pallas_src>

<mosaic_0001>
module attributes {stable_mosaic.version = 11 : i64} {
  func.func @_bcqf_kernel(%arg0: i32, %arg1: memref<8x128xbf16, #tpu.memory_space<vmem>>, %arg2: memref<384x128xbf16, #tpu.memory_space<vmem>>, %arg3: memref<8x128xf32, #tpu.memory_space<vmem>>, %arg4: memref<8x30xf32, #tpu.memory_space<vmem>>) attributes {dimension_semantics = [#tpu.dimension_semantics<parallel>], iteration_bounds = array<i64: 1>, scalar_prefetch = 0 : i64, scratch_operands = 0 : i64, tpu.core_type = #tpu.core_type<tc>, window_params = [{transform_indices = @transform_0, window_bounds = array<i64: 8, 128>}, {pipeline_mode = #tpu.pipeline_mode<synchronous>, transform_indices = @transform_1, window_bounds = array<i64: 384, 128>}, {pipeline_mode = #tpu.pipeline_mode<synchronous>, transform_indices = @transform_2, window_bounds = array<i64: 8, 128>}, {transform_indices = @transform_3, window_bounds = array<i64: 8, 30>}]} {
    %c0 = arith.constant 0 : index
    %c0_0 = arith.constant 0 : index
    %0 = vector.load %arg1[%c0, %c0_0] : memref<8x128xbf16, #tpu.memory_space<vmem>>, vector<8x128xbf16>
    %c0_1 = arith.constant 0 : index
    %c0_2 = arith.constant 0 : index
    %1 = vector.load %arg2[%c0_1, %c0_2] : memref<384x128xbf16, #tpu.memory_space<vmem>>, vector<128x128xbf16>
    %c128 = arith.constant 128 : index
    %c0_3 = arith.constant 0 : index
    %2 = vector.load %arg2[%c128, %c0_3] : memref<384x128xbf16, #tpu.memory_space<vmem>>, vector<128x128xbf16>
    %c256 = arith.constant 256 : index
    %c0_4 = arith.constant 0 : index
    %3 = vector.load %arg2[%c256, %c0_4] : memref<384x128xbf16, #tpu.memory_space<vmem>>, vector<128x128xbf16>
    %cst = arith.constant dense<0.000000e+00> : vector<8x128xf32>
    %4 = tpu.matmul %0, %1, %cst {dimension_numbers = #tpu.dot_dimension_numbers<[1], [0], [0], [1], [0, 0, 1, 1], [], []>} : vector<8x128xbf16>, vector<128x128xbf16>, vector<8x128xf32> -> vector<8x128xf32>
    %c0_5 = arith.constant 0 : index
    %c0_6 = arith.constant 0 : index
    %5 = vector.load %arg3[%c0_5, %c0_6] : memref<8x128xf32, #tpu.memory_space<vmem>>, vector<1x128xf32>
    %6 = vector.broadcast %5 : vector<1x128xf32> to vector<8x128xf32>
    %7 = arith.addf %4, %6 : vector<8x128xf32>
    %cst_7 = arith.constant 0.000000e+00 : f32
    %8 = vector.broadcast %cst_7 : f32 to vector<8x128xf32>
    %9 = arith.maximumf %7, %8 : vector<8x128xf32>
    %10 = arith.truncf %9 : vector<8x128xf32> to vector<8x128xbf16>
    %cst_8 = arith.constant dense<0.000000e+00> : vector<8x128xf32>
    %11 = tpu.matmul %10, %2, %cst_8 {dimension_numbers = #tpu.dot_dimension_numbers<[1], [0], [0], [1], [0, 0, 1, 1], [], []>} : vector<8x128xbf16>, vector<128x128xbf16>, vector<8x128xf32> -> vector<8x128xf32>
    %c1 = arith.constant 1 : index
    %c0_9 = arith.constant 0 : index
    %12 = vector.load %arg3[%c1, %c0_9] : memref<8x128xf32, #tpu.memory_space<vmem>>, vector<1x128xf32>
    %13 = vector.broadcast %12 : vector<1x128xf32> to vector<8x128xf32>
    %14 = arith.addf %11, %13 : vector<8x128xf32>
    %cst_10 = arith.constant 0.000000e+00 : f32
    %15 = vector.broadcast %cst_10 : f32 to vector<8x128xf32>
    %16 = arith.maximumf %14, %15 : vector<8x128xf32>
    %17 = arith.truncf %16 : vector<8x128xf32> to vector<8x128xbf16>
    %cst_11 = arith.constant dense<0.000000e+00> : vector<8x128xf32>
    %18 = tpu.matmul %17, %3, %cst_11 {dimension_numbers = #tpu.dot_dimension_numbers<[1], [0], [0], [1], [0, 0, 1, 1], [], []>} : vector<8x128xbf16>, vector<128x128xbf16>, vector<8x128xf32> -> vector<8x128xf32>
    %c2 = arith.constant 2 : index
    %c0_12 = arith.constant 0 : index
    %19 = vector.load %arg3[%c2, %c0_12] : memref<8x128xf32, #tpu.memory_space<vmem>>, vector<1x128xf32>
    %20 = vector.broadcast %19 : vector<1x128xf32> to vector<8x128xf32>
    %21 = arith.addf %18, %20 : vector<8x128xf32>
    %22 = vector.extract_strided_slice %21 {offsets = [0, 0], sizes = [8, 10], strides = [1, 1]} : vector<8x128xf32> to vector<8x10xf32>
    %23 = vector.extract_strided_slice %21 {offsets = [0, 10], sizes = [8, 10], strides = [1, 1]} : vector<8x128xf32> to vector<8x10xf32>
    %cst_13 = arith.constant dense<0xFF800000> : vector<8xf32>
    %24 = vector.multi_reduction <maximumf>, %23, %cst_13 [1] : vector<8x10xf32> to vector<8xf32>
    %25 = vector.shape_cast %24 : vector<8xf32> to vector<8x1xf32>
    %26 = vector.broadcast %25 : vector<8x1xf32> to vector<8x10xf32>
    %27 = arith.subf %23, %26 : vector<8x10xf32>
    %28 = math.exp %27 : vector<8x10xf32>
    %cst_14 = arith.constant dense<0.000000e+00> : vector<8xf32>
    %29 = vector.multi_reduction <add>, %28, %cst_14 [1] : vector<8x10xf32> to vector<8xf32>
    %30 = vector.shape_cast %29 : vector<8xf32> to vector<8x1xf32>
    %31 = math.log %30 : vector<8x1xf32>
    %32 = vector.broadcast %31 : vector<8x1xf32> to vector<8x10xf32>
    %33 = arith.subf %27, %32 : vector<8x10xf32>
    %34 = tpu.concatenate %22, %33, %23 in 1 : vector<8x10xf32>, vector<8x10xf32>, vector<8x10xf32> -> vector<8x30xf32>
    %c0_15 = arith.constant 0 : index
    %c0_16 = arith.constant 0 : index
    %35 = vector.load %arg4[%c0_15, %c0_16] : memref<8x30xf32, #tpu.memory_space<vmem>>, vector<8x30xf32>
    tpu.vector_store %arg4[%c0_15, %c0_16], %34 {strides = array<i32>} : memref<8x30xf32, #tpu.memory_space<vmem>>, vector<8x30xf32>,
    return
  }
  func.func @transform_0(%arg0: i32) -> (i32, i32) {
    %c0_i32 = arith.constant 0 : i32
    %c0_i32_0 = arith.constant 0 : i32
    return %arg0, %c0_i32 : i32, i32
  }
  func.func @transform_1(%arg0: i32) -> (i32, i32) {
    %c0_i32 = arith.constant 0 : i32
    %c0_i32_0 = arith.constant 0 : i32
    %c0_i32_1 = arith.constant 0 : i32
    return %c0_i32, %c0_i32_0 : i32, i32
  }
  func.func @transform_2(%arg0: i32) -> (i32, i32) {
    %c0_i32 = arith.constant 0 : i32
    %c0_i32_0 = arith.constant 0 : i32
    %c0_i32_1 = arith.constant 0 : i32
    return %c0_i32, %c0_i32_0 : i32, i32
  }
  func.func @transform_3(%arg0: i32) -> (i32, i32) {
    %c0_i32 = arith.constant 0 : i32
    %c0_i32_0 = arith.constant 0 : i32
    return %arg0, %c0_i32 : i32, i32
  }
}

</mosaic_0001>

<llo_original>
// kernel: bcqf_forward.1
$region0: #{bcqf_forward.1}
  #allocation0 [shape = 'u32[]', space=smem, size = 0x4, offset = 0x4, fixed_abs, tag = 'smem constant byte address 0x4 - core index']
  #allocation1 [shape = 'u32[144,128]{1,0:T(1,128)}', space=vmem, size = 0x12000, scoped, tag = 'internal scratch']
  %s0 = inlined_call_operand.vmem [shape: bf16[8,128], index: 0, kind: input, shape index: {}]
  %s1 = inlined_call_operand.vmem [shape: bf16[384,128], index: 1, kind: input, shape index: {}]
  %s2 = inlined_call_operand.vmem [shape: f32[8,128], index: 2, kind: input, shape index: {}]
  %s3 = inlined_call_operand.vmem [shape: f32[8,30], index: 3, kind: output, shape index: {}]
  %s4 = sld [smem:[#allocation0]]
  $region22: #{bcqf_forward.1} parent=0
    _
  %s6 = ssub.s32 1, %s4
  %s7 = scalar_select 0, %s6, %s4
  // Predicated region
  $region2: #{bcqf_forward.1} parent=0 // pred_check
    _
  $region3: #{bcqf_forward.1} parent=0 // pred_check_branch
    %9 = sbr.rel (0) target = $region5
  $region4: #{bcqf_forward.1} parent=0 // pred_region
    _
  $region5: #{bcqf_forward.1} parent=0 // pred_fallthru
    _
  // Predicated region
  $region6: #{bcqf_forward.1} parent=0 // pred_check
    _
  $region7: #{bcqf_forward.1} parent=0 // pred_check_branch
    %11 = sbr.rel (0) target = $region9
  $region8: #{bcqf_forward.1} parent=0 // pred_region
    _
  $region9: #{bcqf_forward.1} parent=0 // pred_fallthru
    _
  // Predicated region
  $region10: #{bcqf_forward.1} parent=0 // pred_check
    _
  $region11: #{bcqf_forward.1} parent=0 // pred_check_branch
    %13 = sbr.rel (0) target = $region13
  $region12: #{bcqf_forward.1} parent=0 // pred_region
    _
  $region13: #{bcqf_forward.1} parent=0 // pred_fallthru
    _
  %v15 = vld [vmem:[%s0] sm:$0xf]
  %v16 = vld [vmem:[%s1] sm:$0xf]
  %v17 = vld [vmem:[%s1 + $0x4] sm:$0xf]
  %v18 = vld [vmem:[%s1 + $0x8] sm:$0xf]
  %v19 = vld [vmem:[%s1 + $0xc] sm:$0xf]
  %v20 = vld [vmem:[%s1 + $0x10] sm:$0xf]
  %v21 = vld [vmem:[%s1 + $0x14] sm:$0xf]
  %v22 = vld [vmem:[%s1 + $0x18] sm:$0xf]
  %v23 = vld [vmem:[%s1 + $0x1c] sm:$0xf]
  %v24 = vld [vmem:[%s1 + $0x20] sm:$0xf]
  %v25 = vld [vmem:[%s1 + $0x24] sm:$0xf]
  %v26 = vld [vmem:[%s1 + $0x28] sm:$0xf]
  %v27 = vld [vmem:[%s1 + $0x2c] sm:$0xf]
  %v28 = vld [vmem:[%s1 + $0x30] sm:$0xf]
  %v29 = vld [vmem:[%s1 + $0x34] sm:$0xf]
  %v30 = vld [vmem:[%s1 + $0x38] sm:$0xf]
  %v31 = vld [vmem:[%s1 + $0x3c] sm:$0xf]
  %v32 = vld [vmem:[%s1 + $0x40] sm:$0xf]
  %v33 = vld [vmem:[%s1 + $0x44] sm:$0xf]
  %v34 = vld [vmem:[%s1 + $0x48] sm:$0xf]
  %v35 = vld [vmem:[%s1 + $0x4c] sm:$0xf]
  %v36 = vld [vmem:[%s1 + $0x50] sm:$0xf]
  %v37 = vld [vmem:[%s1 + $0x54] sm:$0xf]
  %v38 = vld [vmem:[%s1 + $0x58] sm:$0xf]
  %v39 = vld [vmem:[%s1 + $0x5c] sm:$0xf]
  %v40 = vld [vmem:[%s1 + $0x60] sm:$0xf]
  %v41 = vld [vmem:[%s1 + $0x64] sm:$0xf]
  %v42 = vld [vmem:[%s1 + $0x68] sm:$0xf]
  %v43 = vld [vmem:[%s1 + $0x6c] sm:$0xf]
  %v44 = vld [vmem:[%s1 + $0x70] sm:$0xf]
  %v45 = vld [vmem:[%s1 + $0x74] sm:$0xf]
  %v46 = vld [vmem:[%s1 + $0x78] sm:$0xf]
  %v47 = vld [vmem:[%s1 + $0x7c] sm:$0xf]
  %v48 = vld [vmem:[%s1 + $0x80] sm:$0xf]
  %v49 = vld [vmem:[%s1 + $0x84] sm:$0xf]
  %v50 = vld [vmem:[%s1 + $0x88] sm:$0xf]
  %v51 = vld [vmem:[%s1 + $0x8c] sm:$0xf]
  %v52 = vld [vmem:[%s1 + $0x90] sm:$0xf]
  %v53 = vld [vmem:[%s1 + $0x94] sm:$0xf]
  %v54 = vld [vmem:[%s1 + $0x98] sm:$0xf]
  %v55 = vld [vmem:[%s1 + $0x9c] sm:$0xf]
  %v56 = vld [vmem:[%s1 + $0xa0] sm:$0xf]
  %v57 = vld [vmem:[%s1 + $0xa4] sm:$0xf]
  %v58 = vld [vmem:[%s1 + $0xa8] sm:$0xf]
  %v59 = vld [vmem:[%s1 + $0xac] sm:$0xf]
  %v60 = vld [vmem:[%s1 + $0xb0] sm:$0xf]
  %v61 = vld [vmem:[%s1 + $0xb4] sm:$0xf]
  %v62 = vld [vmem:[%s1 + $0xb8] sm:$0xf]
  %v63 = vld [vmem:[%s1 + $0xbc] sm:$0xf]
  %v64 = vld [vmem:[%s2] sm:$0x1]
  %v65 = vlaneseq
  %v66 = vshrl.u32 %v65, 7
  %v67 = vsub.s32 0, %v66
  %v68 = vrot.slane %v64, %v67
  %v85 = vunpack.c.l.b16 %v16
  %v86 = vunpack.c.l.b16 %v17
  %v87 = vunpack.c.l.b16 %v18
  %v88 = vunpack.c.l.b16 %v19
  %v89 = vunpack.c.l.b16 %v20
  %v90 = vunpack.c.l.b16 %v21
  %v91 = vunpack.c.l.b16 %v22
  %v92 = vunpack.c.l.b16 %v23
  %v93 = vunpack.c.l.b16 %v24
  %v94 = vunpack.c.l.b16 %v25
  %v95 = vunpack.c.l.b16 %v26
  %v96 = vunpack.c.l.b16 %v27
  %v97 = vunpack.c.l.b16 %v28
  %v98 = vunpack.c.l.b16 %v29
  %v99 = vunpack.c.l.b16 %v30
  %v100 = vunpack.c.l.b16 %v31
  %v101 = vpack.c.b16 %v86, %v85
  %v102 = vpack.c.b16 %v88, %v87
  %v103 = vpack.c.b16 %v90, %v89
  %v104 = vpack.c.b16 %v92, %v91
  %v105 = vpack.c.b16 %v94, %v93
  %v106 = vpack.c.b16 %v96, %v95
  %v107 = vpack.c.b16 %v98, %v97
  %v108 = vpack.c.b16 %v100, %v99
  %117 = vmatprep.subr.bf16.mxu0 0
  %118 = vmatpush1.bf16.msra.mxu0 %v101
  %119 = vmatprep.subr.bf16.mxu0 0
  %120 = vmatpush1.bf16.msra.mxu0 %v102
  %121 = vmatprep.subr.bf16.mxu0 0
  %122 = vmatpush1.bf16.msra.mxu0 %v103
  %123 = vmatprep.subr.bf16.mxu0 0
  %124 = vmatpush1.bf16.msra.mxu0 %v104
  %125 = vmatprep.subr.bf16.mxu0 0
  %126 = vmatpush1.bf16.msra.mxu0 %v105
  %127 = vmatprep.subr.bf16.mxu0 0
  %128 = vmatpush1.bf16.msra.mxu0 %v106
  %129 = vmatprep.subr.bf16.mxu0 0
  %130 = vmatpush1.bf16.msra.mxu0 %v107
  %131 = vmatprep.subr.bf16.mxu0 0
  %132 = vmatpush1.bf16.msra.mxu0 %v108
  %133 = vmatprep.subr.bf16.mxu0 0
  %134 = vmatpush1.bf16.msra.mxu0 0
  %135 = vmatprep.subr.bf16.mxu0 0
  %136 = vmatpush1.bf16.msra.mxu0 0
  %137 = vmatprep.subr.bf16.mxu0 0
  %138 = vmatpush1.bf16.msra.mxu0 0
  %139 = vmatprep.subr.bf16.mxu0 0
  %140 = vmatpush1.bf16.msra.mxu0 0
  %141 = vmatprep.subr.bf16.mxu0 0
  %142 = vmatpush1.bf16.msra.mxu0 0
  %143 = vmatprep.subr.bf16.mxu0 0
  %144 = vmatpush1.bf16.msra.mxu0 0
  %145 = vmatprep.subr.bf16.mxu0 0
  %146 = vmatpush1.bf16.msra.mxu0 0
  %147 = vmatprep.subr.bf16.mxu0 0
  %148 = vmatpush1.bf16.msra.mxu0 0
  %149 = vmatprep.mubr.bf16.mxu0 0
  %150 = vmatmul.mubr.bf16.gmra.mrb[0].mxu0 %v15
  %v151 = vpop.f32.mrb[0].mxu0
  %v152 = vadd.f32 %v68, %v151
  %v153 = vpop.f32.mrb[0].mxu0
  %v154 = vpop.f32.mrb[0].mxu0
  %v155 = vpop.f32.mrb[0].mxu0
  %156 = vdwg.mxu0
  %v157 = vmax.f32 %v152, 0.0
  %v158 = vpack.c.bf16 %v157, %v157
  %v159 = vld [vmem:[%s2 + $0x1] sm:$0x1]
  %v160 = vlaneseq
  %v161 = vshrl.u32 %v160, 7
  %v162 = vsub.s32 0, %v161
  %v163 = vrot.slane %v159, %v162
  %v180 = vunpack.c.l.b16 %v32
  %v181 = vunpack.c.l.b16 %v33
  %v182 = vunpack.c.l.b16 %v34
  %v183 = vunpack.c.l.b16 %v35
  %v184 = vunpack.c.l.b16 %v36
  %v185 = vunpack.c.l.b16 %v37
  %v186 = vunpack.c.l.b16 %v38
  %v187 = vunpack.c.l.b16 %v39
  %v188 = vunpack.c.l.b16 %v40
  %v189 = vunpack.c.l.b16 %v41
  %v190 = vunpack.c.l.b16 %v42
  %v191 = vunpack.c.l.b16 %v43
  %v192 = vunpack.c.l.b16 %v44
  %v193 = vunpack.c.l.b16 %v45
  %v194 = vunpack.c.l.b16 %v46
  %v195 = vunpack.c.l.b16 %v47
  %v196 = vpack.c.b16 %v181, %v180
  %v197 = vpack.c.b16 %v183, %v182
  %v198 = vpack.c.b16 %v185, %v184
  %v199 = vpack.c.b16 %v187, %v186
  %v200 = vpack.c.b16 %v189, %v188
  %v201 = vpack.c.b16 %v191, %v190
  %v202 = vpack.c.b16 %v193, %v192
  %v203 = vpack.c.b16 %v195, %v194
  %212 = vmatprep.subr.bf16.mxu0 0
  %213 = vmatpush1.bf16.msra.mxu0 %v196
  %214 = vmatprep.subr.bf16.mxu0 0
  %215 = vmatpush1.bf16.msra.mxu0 %v197
  %216 = vmatprep.subr.bf16.mxu0 0
  %217 = vmatpush1.bf16.msra.mxu0 %v198
  %218 = vmatprep.subr.bf16.mxu0 0
  %219 = vmatpush1.bf16.msra.mxu0 %v199
  %220 = vmatprep.subr.bf16.mxu0 0
  %221 = vmatpush1.bf16.msra.mxu0 %v200
  %222 = vmatprep.subr.bf16.mxu0 0
  %223 = vmatpush1.bf16.msra.mxu0 %v201
  %224 = vmatprep.subr.bf16.mxu0 0
  %225 = vmatpush1.bf16.msra.mxu0 %v202
  %226 = vmatprep.subr.bf16.mxu0 0
  %227 = vmatpush1.bf16.msra.mxu0 %v203
  %228 = vmatprep.subr.bf16.mxu0 0
  %229 = vmatpush1.bf16.msra.mxu0 0
  %230 = vmatprep.subr.bf16.mxu0 0
  %231 = vmatpush1.bf16.msra.mxu0 0
  %232 = vmatprep.subr.bf16.mxu0 0
  %233 = vmatpush1.bf16.msra.mxu0 0
  %234 = vmatprep.subr.bf16.mxu0 0
  %235 = vmatpush1.bf16.msra.mxu0 0
  %236 = vmatprep.subr.bf16.mxu0 0
  %237 = vmatpush1.bf16.msra.mxu0 0
  %238 = vmatprep.subr.bf16.mxu0 0
  %239 = vmatpush1.bf16.msra.mxu0 0
  %240 = vmatprep.subr.bf16.mxu0 0
  %241 = vmatpush1.bf16.msra.mxu0 0
  %242 = vmatprep.subr.bf16.mxu0 0
  %243 = vmatpush1.bf16.msra.mxu0 0
  %244 = vmatprep.mubr.bf16.mxu0 0
  %245 = vmatmul.mubr.bf16.gmra.mrb[0].mxu0 %v158
  %v246 = vpop.f32.mrb[0].mxu0
  %v247 = vadd.f32 %v163, %v246
  %v248 = vpop.f32.mrb[0].mxu0
  %v249 = vpop.f32.mrb[0].mxu0
  %v250 = vpop.f32.mrb[0].mxu0
  %251 = vdwg.mxu0
  %v252 = vmax.f32 %v247, 0.0
  %v253 = vpack.c.bf16 %v252, %v252
  %v254 = vld [vmem:[%s2 + $0x2] sm:$0x1]
  %v255 = vlaneseq
  %v256 = vshrl.u32 %v255, 7
  %v257 = vsub.s32 0, %v256
  %v258 = vrot.slane %v254, %v257
  %v275 = vunpack.c.l.b16 %v48
  %v276 = vunpack.c.l.b16 %v49
  %v277 = vunpack.c.l.b16 %v50
  %v278 = vunpack.c.l.b16 %v51
  %v279 = vunpack.c.l.b16 %v52
  %v280 = vunpack.c.l.b16 %v53
  %v281 = vunpack.c.l.b16 %v54
  %v282 = vunpack.c.l.b16 %v55
  %v283 = vunpack.c.l.b16 %v56
  %v284 = vunpack.c.l.b16 %v57
  %v285 = vunpack.c.l.b16 %v58
  %v286 = vunpack.c.l.b16 %v59
  %v287 = vunpack.c.l.b16 %v60
  %v288 = vunpack.c.l.b16 %v61
  %v289 = vunpack.c.l.b16 %v62
  %v290 = vunpack.c.l.b16 %v63
  %v291 = vpack.c.b16 %v276, %v275
  %v292 = vpack.c.b16 %v278, %v277
  %v293 = vpack.c.b16 %v280, %v279
  %v294 = vpack.c.b16 %v282, %v281
  %v295 = vpack.c.b16 %v284, %v283
  %v296 = vpack.c.b16 %v286, %v285
  %v297 = vpack.c.b16 %v288, %v287
  %v298 = vpack.c.b16 %v290, %v289
  %307 = vmatprep.subr.bf16.mxu0 0
  %308 = vmatpush1.bf16.msra.mxu0 %v291
  %309 = vmatprep.subr.bf16.mxu0 0
  %310 = vmatpush1.bf16.msra.mxu0 %v292
  %311 = vmatprep.subr.bf16.mxu0 0
  %312 = vmatpush1.bf16.msra.mxu0 %v293
  %313 = vmatprep.subr.bf16.mxu0 0
  %314 = vmatpush1.bf16.msra.mxu0 %v294
  %315 = vmatprep.subr.bf16.mxu0 0
  %316 = vmatpush1.bf16.msra.mxu0 %v295
  %317 = vmatprep.subr.bf16.mxu0 0
  %318 = vmatpush1.bf16.msra.mxu0 %v296
  %319 = vmatprep.subr.bf16.mxu0 0
  %320 = vmatpush1.bf16.msra.mxu0 %v297
  %321 = vmatprep.subr.bf16.mxu0 0
  %322 = vmatpush1.bf16.msra.mxu0 %v298
  %323 = vmatprep.subr.bf16.mxu0 0
  %324 = vmatpush1.bf16.msra.mxu0 0
  %325 = vmatprep.subr.bf16.mxu0 0
  %326 = vmatpush1.bf16.msra.mxu0 0
  %327 = vmatprep.subr.bf16.mxu0 0
  %328 = vmatpush1.bf16.msra.mxu0 0
  %329 = vmatprep.subr.bf16.mxu0 0
  %330 = vmatpush1.bf16.msra.mxu0 0
  %331 = vmatprep.subr.bf16.mxu0 0
  %332 = vmatpush1.bf16.msra.mxu0 0
  %333 = vmatprep.subr.bf16.mxu0 0
  %334 = vmatpush1.bf16.msra.mxu0 0
  %335 = vmatprep.subr.bf16.mxu0 0
  %336 = vmatpush1.bf16.msra.mxu0 0
  %337 = vmatprep.subr.bf16.mxu0 0
  %338 = vmatpush1.bf16.msra.mxu0 0
  %339 = vmatprep.mubr.bf16.mxu0 0
  %340 = vmatmul.mubr.bf16.gmra.mrb[0].mxu0 %v253
  %v341 = vpop.f32.mrb[0].mxu0
  %v342 = vadd.f32 %v258, %v341
  %v343 = vpop.f32.mrb[0].mxu0
  %v344 = vpop.f32.mrb[0].mxu0
  %v345 = vpop.f32.mrb[0].mxu0
  %346 = vdwg.mxu0
  %vm347 = vcmask 162896
  %v348 = vsel %vm347, %v342, -inf
  %349 = vmax.xlane.f32.xlu0 %v348
  %v350 = vpop.xlane.xlu0 %349
  %v351 = vsub.f32 %v342, %v350
  %v352 = vmul.f32 %v351, 1.442695
  %v353 = vpow.pop %v352
  %355 = vrot.lane.b32.xlu0 %v353, 118
  %v356 = vpop.permute.xlu0 %355
  %vm358 = vcmask 80896
  %v359 = vsel %vm358, %v356, 0.0
  %360 = vadd.xlane.f32.xlu0 %v359
  %v361 = vpop.xlane.xlu0 %360
  %v362 = vlog2.pop %v361
  %v363 = vmul.f32 %v362, 0.6931472
  %v364 = vsub.f32 %v351, %v363
  %366 = vrot.lane.b32.xlu0 %v342, 10
  %v367 = vpop.permute.xlu0 %366
  %v369 = vsel %vm358, %v342, %v364
  %vm370 = vcmask 162816
  %v371 = vsel %vm370, %v369, %v367
  %vm372 = vcmask 244736
  %373 = vst.msk [vmem:[%s3] sm:$0xff] %vm372, %v371
  // Predicated region
  $region14: #{bcqf_forward.1} parent=0 // pred_check
    _
  $region15: #{bcqf_forward.1} parent=0 // pred_check_branch
    %375 = sbr.rel (0) target = $region17
  $region16: #{bcqf_forward.1} parent=0 // pred_region
    _
  $region17: #{bcqf_forward.1} parent=0 // pred_fallthru
    _
  // Predicated region
  $region18: #{bcqf_forward.1} parent=0 // pred_check
    _
  $region19: #{bcqf_forward.1} parent=0 // pred_check_branch
    %377 = sbr.rel (0) target = $region21
  $region20: #{bcqf_forward.1} parent=0 // pred_region
    _
  $region21: #{bcqf_forward.1} parent=0 // pred_fallthru
    _

</llo_original>
